<compile_context>
chip_gen: v7x
topology: tpu7x:2x2x1
jax: 0.10.0
libtpu: 0.0.40
codegen_flags: <defaults>
</compile_context>

<pallas_src>
import jax
import jax.numpy as jnp
from jax.experimental import pallas as pl
from jax.experimental.pallas import tpu as pltpu


def _rope_kernel(cos_ref, sin_ref, q_ref, k_ref, qo_ref, ko_ref):
    """Elementwise RoPE hot path, pure VPU mul/add work.

    x = [x1, x2] (halves of the last dim).  rotate_half(x) = [-x2, x1], and
    the cos/sin tables repeat their first D/2 columns, so
        out[:, :D/2] = x1*cos_h - x2*sin_h
        out[:, D/2:] = x2*cos_h + x1*sin_h
    cos_h/sin_h are f32; mixed-dtype promotion (bf16 q/k) happens per-op.
    """
    cos_h = cos_ref[...]          # (TS, D/2) f32
    sin_h = sin_ref[...]          # (TS, D/2) f32
    half = cos_h.shape[-1]

    def apply(x_ref, o_ref):
        x = x_ref[...]            # (TBH, TS, D)
        x1 = x[..., :half]
        x2 = x[..., half:]
        o1 = x1 * cos_h - x2 * sin_h
        o2 = x2 * cos_h + x1 * sin_h
        o_ref[...] = jnp.concatenate([o1, o2], axis=-1).astype(o_ref.dtype)

    apply(q_ref, qo_ref)
    apply(k_ref, ko_ref)


def _largest_divisor(extent, target, quantum):
    """Largest divisor of `extent` that is <= target and a multiple of `quantum`.

    Falls back to the full extent (a full-dim block is always legal w.r.t. the
    (8, 128) tiling constraint).
    TODO(synk): pad + mask a partial last block instead of the full-extent
    fallback for pathological (prime-ish) extents that exceed the VMEM budget.
    """
    if extent <= target:
        return extent
    for cand in range(min(target, extent), 0, -1):
        if extent % cand == 0 and cand % quantum == 0:
            return cand
    return extent


def _rope_tables(S, D, theta):
    """Half-width RoPE tables (S, D/2).  Matches the torch buffer `freqs`.

    Hoisted out of the hot path; under jit with static shapes this is traced
    once and cached.
    """
    inv_freq = 1.0 / (theta ** (jnp.arange(0, D, 2, dtype=jnp.float32) / D))
    t = jnp.arange(S, dtype=jnp.float32)
    f_half = jnp.outer(t, inv_freq)                  # (S, D/2)
    return jnp.cos(f_half), jnp.sin(f_half)


def rope_pallas(q, k, theta=10000.0):
    B, H, S, D = q.shape
    assert k.shape == (B, H, S, D)
    assert D % 2 == 0, "RoPE head dim must be even"
    BH = B * H
    Dh = D // 2
    itemsize = jnp.dtype(q.dtype).itemsize

    cos_h, sin_h = _rope_tables(S, D, theta)

    # Free reshapes (row-major collapse) — q/k stay as separate HBM streams to
    # avoid an extra full-tensor copy that a stack/concat would cost.
    qf = q.reshape(BH, S, D)
    kf = k.reshape(BH, S, D)

    # --- generation-aware tiling --------------------------------------------
    # Purely HBM-bandwidth bound; size blocks off the actual VMEM capacity so
    # v5e/v6e (128 MiB) tile big while v7x (64 MiB physical) stays safe.
    try:
        vmem_cap = int(pltpu.get_tpu_info().vmem_capacity_bytes)
    except Exception:
        vmem_cap = 64 * 1024 * 1024        # conservative (v7x) fallback
    budget = int(0.40 * vmem_cap)          # target for the double-buffered set

    # Sublane quantum for the q/k dtype: 8 (f32), 16 (bf16), 32 (int8/fp8).
    quantum = max(8, 32 // itemsize)

    # Seq tile: keep each (TS, D/2) f32 table block a small slice of budget.
    table_budget = max(4 * 1024, budget // 24)
    TS = _largest_divisor(S, max(quantum, table_budget // max(1, Dh * 4)), quantum)

    # BH tile: fill the remaining (single-buffer) budget across the 4 q/k
    # streams; double buffering is the 2x already taken out of `budget`.
    single_buf = budget // 2
    qk_budget = max(1, (single_buf - 2 * TS * Dh * 4) // 4)
    TBH = _largest_divisor(BH, max(1, qk_budget // max(1, TS * D * itemsize)), 1)

    # Keep >=2 grid steps on a parallel axis when the shape allows it (v7x has
    # 2 TensorCores; a 1x1 grid leaves one idle).
    if S // TS == 1 and BH // TBH == 1 and BH >= 2:
        TBH = _largest_divisor(BH, BH // 2, 1)

    # Grid order: seq outer, BH inner → the cos/sin block index is constant
    # across the inner sweep, so the tables are revisited, not re-DMA'd.
    grid = (S // TS, BH // TBH)

    # TODO(synk): for head_dim < 128, fold 128//D heads into the lane axis for
    # lane-dense stores (needs a per-segment split of the half-slices).

    qo, ko = pl.pallas_call(
        _rope_kernel,
        out_shape=(
            jax.ShapeDtypeStruct((BH, S, D), q.dtype),
            jax.ShapeDtypeStruct((BH, S, D), k.dtype),
        ),
        grid=grid,
        in_specs=[
            pl.BlockSpec((TS, Dh), lambda s, b: (s, 0)),           # cos half
            pl.BlockSpec((TS, Dh), lambda s, b: (s, 0)),           # sin half
            pl.BlockSpec((TBH, TS, D), lambda s, b: (b, s, 0)),    # q block
            pl.BlockSpec((TBH, TS, D), lambda s, b: (b, s, 0)),    # k block
        ],
        out_specs=(
            pl.BlockSpec((TBH, TS, D), lambda s, b: (b, s, 0)),
            pl.BlockSpec((TBH, TS, D), lambda s, b: (b, s, 0)),
        ),
        compiler_params=pltpu.CompilerParams(
            dimension_semantics=("parallel", "parallel"),
            vmem_limit_bytes=int(0.75 * vmem_cap),
        ),
    )(cos_h, sin_h, qf, kf)

    return qo.reshape(B, H, S, D), ko.reshape(B, H, S, D)


def _rope_ref(q, k, theta=10000.0):
    """Pure-JAX reference mirroring the PyTorch forward."""
    B, H, S, D = q.shape
    inv_freq = 1.0 / (theta ** (jnp.arange(0, D, 2, dtype=jnp.float32) / D))
    t = jnp.arange(S, dtype=jnp.float32)
    f = jnp.outer(t, inv_freq)
    f = jnp.concatenate([f, f], axis=-1)

    def rotate_half(x):
        x1, x2 = jnp.split(x, 2, axis=-1)
        return jnp.concatenate([-x2, x1], axis=-1)

    def apply(x):
        return x * jnp.cos(f) + rotate_half(x) * jnp.sin(f)

    return apply(q), apply(k)


if __name__ == "__main__":
    B, H, S, D = 2, 4, 8, 32
    key = jax.random.PRNGKey(0)
    kq, kk = jax.random.split(key)
    q = jax.random.normal(kq, (B, H, S, D), dtype=jnp.float32)
    k = jax.random.normal(kk, (B, H, S, D), dtype=jnp.float32)

    q_out, k_out = rope_pallas(q, k)
    jax.block_until_ready((q_out, k_out))

    q_ref, k_ref = _rope_ref(q, k)
    assert jnp.allclose(q_out, q_ref, atol=1e-5, rtol=1e-5)
    assert jnp.allclose(k_out, k_ref, atol=1e-5, rtol=1e-5)

    print("KERNEL_OK")
</pallas_src>

<mosaic_0001>
module attributes {stable_mosaic.version = 11 : i64} {
  func.func @_rope_kernel(%arg0: i32, %arg1: i32, %arg2: memref<8x16xf32, #tpu.memory_space<vmem>>, %arg3: memref<8x16xf32, #tpu.memory_space<vmem>>, %arg4: memref<4x8x32xf32, #tpu.memory_space<vmem>>, %arg5: memref<4x8x32xf32, #tpu.memory_space<vmem>>, %arg6: memref<4x8x32xf32, #tpu.memory_space<vmem>>, %arg7: memref<4x8x32xf32, #tpu.memory_space<vmem>>) attributes {dimension_semantics = [#tpu.dimension_semantics<parallel>, #tpu.dimension_semantics<parallel>], iteration_bounds = array<i64: 1, 2>, scalar_prefetch = 0 : i64, scratch_operands = 0 : i64, tpu.core_type = #tpu.core_type<tc>, window_params = [{transform_indices = @transform_0, window_bounds = array<i64: 8, 16>}, {transform_indices = @transform_1, window_bounds = array<i64: 8, 16>}, {transform_indices = @transform_2, window_bounds = array<i64: 4, 8, 32>}, {transform_indices = @transform_3, window_bounds = array<i64: 4, 8, 32>}, {transform_indices = @transform_4, window_bounds = array<i64: 4, 8, 32>}, {transform_indices = @transform_5, window_bounds = array<i64: 4, 8, 32>}]} {
    %c0 = arith.constant 0 : index
    %c0_0 = arith.constant 0 : index
    %0 = vector.load %arg2[%c0, %c0_0] : memref<8x16xf32, #tpu.memory_space<vmem>>, vector<8x16xf32>
    %c0_1 = arith.constant 0 : index
    %c0_2 = arith.constant 0 : index
    %1 = vector.load %arg3[%c0_1, %c0_2] : memref<8x16xf32, #tpu.memory_space<vmem>>, vector<8x16xf32>
    %c0_3 = arith.constant 0 : index
    %c0_4 = arith.constant 0 : index
    %c0_5 = arith.constant 0 : index
    %2 = vector.load %arg4[%c0_3, %c0_4, %c0_5] : memref<4x8x32xf32, #tpu.memory_space<vmem>>, vector<4x8x32xf32>
    %3 = vector.extract_strided_slice %2 {offsets = [0, 0, 0], sizes = [4, 8, 16], strides = [1, 1, 1]} : vector<4x8x32xf32> to vector<4x8x16xf32>
    %4 = vector.extract_strided_slice %2 {offsets = [0, 0, 16], sizes = [4, 8, 16], strides = [1, 1, 1]} : vector<4x8x32xf32> to vector<4x8x16xf32>
    %5 = vector.shape_cast %0 : vector<8x16xf32> to vector<1x8x16xf32>
    %6 = vector.broadcast %5 : vector<1x8x16xf32> to vector<4x8x16xf32>
    %7 = arith.mulf %3, %6 : vector<4x8x16xf32>
    %8 = vector.shape_cast %1 : vector<8x16xf32> to vector<1x8x16xf32>
    %9 = vector.broadcast %8 : vector<1x8x16xf32> to vector<4x8x16xf32>
    %10 = arith.mulf %4, %9 : vector<4x8x16xf32>
    %11 = arith.subf %7, %10 : vector<4x8x16xf32>
    %12 = vector.shape_cast %0 : vector<8x16xf32> to vector<1x8x16xf32>
    %13 = vector.broadcast %12 : vector<1x8x16xf32> to vector<4x8x16xf32>
    %14 = arith.mulf %4, %13 : vector<4x8x16xf32>
    %15 = vector.shape_cast %1 : vector<8x16xf32> to vector<1x8x16xf32>
    %16 = vector.broadcast %15 : vector<1x8x16xf32> to vector<4x8x16xf32>
    %17 = arith.mulf %3, %16 : vector<4x8x16xf32>
    %18 = arith.addf %14, %17 : vector<4x8x16xf32>
    %19 = tpu.concatenate %11, %18 in 2 : vector<4x8x16xf32>, vector<4x8x16xf32> -> vector<4x8x32xf32>
    %c0_6 = arith.constant 0 : index
    %c0_7 = arith.constant 0 : index
    %c0_8 = arith.constant 0 : index
    %20 = vector.load %arg6[%c0_6, %c0_7, %c0_8] : memref<4x8x32xf32, #tpu.memory_space<vmem>>, vector<4x8x32xf32>
    tpu.vector_store %arg6[%c0_6, %c0_7, %c0_8], %19 {strides = array<i32>} : memref<4x8x32xf32, #tpu.memory_space<vmem>>, vector<4x8x32xf32>,
    %c0_9 = arith.constant 0 : index
    %c0_10 = arith.constant 0 : index
    %c0_11 = arith.constant 0 : index
    %21 = vector.load %arg5[%c0_9, %c0_10, %c0_11] : memref<4x8x32xf32, #tpu.memory_space<vmem>>, vector<4x8x32xf32>
    %22 = vector.extract_strided_slice %21 {offsets = [0, 0, 0], sizes = [4, 8, 16], strides = [1, 1, 1]} : vector<4x8x32xf32> to vector<4x8x16xf32>
    %23 = vector.extract_strided_slice %21 {offsets = [0, 0, 16], sizes = [4, 8, 16], strides = [1, 1, 1]} : vector<4x8x32xf32> to vector<4x8x16xf32>
    %24 = vector.shape_cast %0 : vector<8x16xf32> to vector<1x8x16xf32>
    %25 = vector.broadcast %24 : vector<1x8x16xf32> to vector<4x8x16xf32>
    %26 = arith.mulf %22, %25 : vector<4x8x16xf32>
    %27 = vector.shape_cast %1 : vector<8x16xf32> to vector<1x8x16xf32>
    %28 = vector.broadcast %27 : vector<1x8x16xf32> to vector<4x8x16xf32>
    %29 = arith.mulf %23, %28 : vector<4x8x16xf32>
    %30 = arith.subf %26, %29 : vector<4x8x16xf32>
    %31 = vector.shape_cast %0 : vector<8x16xf32> to vector<1x8x16xf32>
    %32 = vector.broadcast %31 : vector<1x8x16xf32> to vector<4x8x16xf32>
    %33 = arith.mulf %23, %32 : vector<4x8x16xf32>
    %34 = vector.shape_cast %1 : vector<8x16xf32> to vector<1x8x16xf32>
    %35 = vector.broadcast %34 : vector<1x8x16xf32> to vector<4x8x16xf32>
    %36 = arith.mulf %22, %35 : vector<4x8x16xf32>
    %37 = arith.addf %33, %36 : vector<4x8x16xf32>
    %38 = tpu.concatenate %30, %37 in 2 : vector<4x8x16xf32>, vector<4x8x16xf32> -> vector<4x8x32xf32>
    %c0_12 = arith.constant 0 : index
    %c0_13 = arith.constant 0 : index
    %c0_14 = arith.constant 0 : index
    %39 = vector.load %arg7[%c0_12, %c0_13, %c0_14] : memref<4x8x32xf32, #tpu.memory_space<vmem>>, vector<4x8x32xf32>
    tpu.vector_store %arg7[%c0_12, %c0_13, %c0_14], %38 {strides = array<i32>} : memref<4x8x32xf32, #tpu.memory_space<vmem>>, vector<4x8x32xf32>,
    return
  }
  func.func @transform_0(%arg0: i32, %arg1: i32) -> (i32, i32) {
    %c0_i32 = arith.constant 0 : i32
    %c0_i32_0 = arith.constant 0 : i32
    return %arg0, %c0_i32 : i32, i32
  }
  func.func @transform_1(%arg0: i32, %arg1: i32) -> (i32, i32) {
    %c0_i32 = arith.constant 0 : i32
    %c0_i32_0 = arith.constant 0 : i32
    return %arg0, %c0_i32 : i32, i32
  }
  func.func @transform_2(%arg0: i32, %arg1: i32) -> (i32, i32, i32) {
    %c0_i32 = arith.constant 0 : i32
    %c0_i32_0 = arith.constant 0 : i32
    return %arg1, %arg0, %c0_i32 : i32, i32, i32
  }
  func.func @transform_3(%arg0: i32, %arg1: i32) -> (i32, i32, i32) {
    %c0_i32 = arith.constant 0 : i32
    %c0_i32_0 = arith.constant 0 : i32
    return %arg1, %arg0, %c0_i32 : i32, i32, i32
  }
  func.func @transform_4(%arg0: i32, %arg1: i32) -> (i32, i32, i32) {
    %c0_i32 = arith.constant 0 : i32
    %c0_i32_0 = arith.constant 0 : i32
    return %arg1, %arg0, %c0_i32 : i32, i32, i32
  }
  func.func @transform_5(%arg0: i32, %arg1: i32) -> (i32, i32, i32) {
    %c0_i32 = arith.constant 0 : i32
    %c0_i32_0 = arith.constant 0 : i32
    return %arg1, %arg0, %c0_i32 : i32, i32, i32
  }
}

</mosaic_0001>

<llo_original>
// kernel: tpu_custom_call.1
$region0: #{tpu_custom_call.1}
  #allocation0 [shape = 'u32[]', space=smem, size = 0x4, offset = 0x4, fixed_abs, tag = 'smem constant byte address 0x4 - core index']
  #allocation1 [shape = 'u32[144,128]{1,0:T(1,128)}', space=vmem, size = 0x12000, scoped, tag = 'internal scratch']
  %s0 = inlined_call_operand.hbm [shape: f32[8,16], index: 0, kind: input, shape index: {}]
  %s1 = inlined_call_operand.hbm [shape: f32[8,16], index: 1, kind: input, shape index: {}]
  %s2 = inlined_call_operand.hbm [shape: f32[8,8,32], index: 2, kind: input, shape index: {}]
  %s3 = inlined_call_operand.hbm [shape: f32[8,8,32], index: 3, kind: input, shape index: {}]
  %s4 = inlined_call_operand.hbm [shape: f32[8,8,32], index: 4, kind: output, shape index: {0}]
  %s5 = inlined_call_operand.hbm [shape: f32[8,8,32], index: 5, kind: output, shape index: {1}]
  %6 = xla_tuple %s4, %s5
  %s7 = sld [smem:[#allocation0]]
  $region73: #{tpu_custom_call.1} parent=0
    _
  %s9 = ssub.s32 1, %s7
  %s10 = scalar_select 0, %s9, %s7
  $region1: #{tpu_custom_call.1} parent=0
    #allocation2 [shape = 'u8[4096]{0}', space=vmem, size = 0x1000, scoped, tag = 'input window, operand 0, single buffered']
    #allocation3 [shape = 's32[2]{0}', space=sflag, size = 0x8, scoped, tag = 'scoped memory for tpu_custom_call.1']
    #allocation4 [shape = 's32[2]{0}', space=sflag, size = 0x8, scoped, tag = 'scoped memory for tpu_custom_call.1']
    #allocation5 [shape = 'u8[4096]{0}', space=vmem, size = 0x1000, scoped, tag = 'input window, operand 1, single buffered']
    #allocation6 [shape = 's32[1]{0}', space=sflag, size = 0x4, scoped, tag = 'scoped memory for tpu_custom_call.1']
    #allocation7 [shape = 'u8[32768]{0}', space=vmem, size = 0x8000, scoped, tag = 'input window, operand 2']
    #allocation8 [shape = 'u8[32768]{0}', space=vmem, size = 0x8000, scoped, tag = 'input window, operand 3']
    #allocation9 [shape = 'u8[32768]{0}', space=vmem, size = 0x8000, scoped, tag = 'output window, operand 0']
    #allocation10 [shape = 'u8[32768]{0}', space=vmem, size = 0x8000, scoped, tag = 'output window, operand 1']
    #allocation11 [shape = 's32[2]{0}', space=sflag, size = 0x8, scoped, tag = 'scoped memory for tpu_custom_call.1']
    %11 = vsyncpa [#allocation3], 0
    %12 = vsyncpa [#allocation6], 0
    %13 = vsyncpa [#allocation4], 0
    %s14 = scalar_lea.sflag [#allocation4], 1
    %15 = vsyncpa %s14, 0
    %16 = vsyncpa [#allocation11], 0
    %s17 = scalar_lea.sflag [#allocation11], 1
    %18 = vsyncpa %s17, 0
    loop: start=0, step=1, limit=4
    $region2: #{tpu_custom_call.1} parent=1 // loop_pre_header
      _
    $region3: #{tpu_custom_call.1} parent=1 // loop_header
      %s20 = sphi 0, %s24
      %p21 = scmp.ge.s32.totalorder %s20, 4
      %s27 = sphi 0, %s39
      %s28 = sphi 0, %s35
      %s29 = sphi 0, %s27
      %s30 = sphi 0, %s28
      %s31 = sphi 0, %s29
      %s32 = sphi 0, %s30
      %s42 = sphi 0, %s44
      %s45 = sphi 0, %s42
      %s46 = sphi 0, %s45
      %s62 = sphi 0, %s46
      %s68 = sphi 0, %s70
      %s71 = sphi 0, %s68
      %s72 = sphi 0, %s71
      %s88 = sphi 0, %s72
      %s96 = sphi 0, %s98
      %s99 = sphi 0, %s96
      %s100 = sphi 0, %s99
      %s116 = sphi 0, %s100
      %s124 = sphi 0, %s126
      %s127 = sphi 0, %s124
      %s128 = sphi 0, %s127
      %s144 = sphi 0, %s128
      %s152 = sphi 0, %s154
      %s155 = sphi 0, %s152
      %s156 = sphi 0, %s155
      %s172 = sphi 0, %s156
      %s180 = sphi 0, %s182
      %s183 = sphi 0, %s180
      %s184 = sphi 0, %s183
      %s200 = sphi 0, %s184
    $region4: #{tpu_custom_call.1} parent=1 // loop_header_branch
      %23 = sbr.rel (%p21) target = $region8
    $region5: #{tpu_custom_call.1} parent=1 // loop_body
      %s25 = ssub.s32 %s20, 1
      %s26 = ssub.s32 %s20, 2
      %s33 = sadd.s32 1, %s28
      %p34 = scmp.ge.s32.totalorder %s33, 2
      %s35 = scalar_select %p34, 0, %s33
      %s36 = sadd.s32 1, %s27
      %s37 = scalar_select %p34, %s36, %s27
      %p38 = scmp.ge.s32.totalorder %s37, 1
      %s39 = scalar_select %p38, 0, %s37
      %s40 = ssub.s32 %s27, %s39
      %p41 = scmp.eq.s32.totalorder %s40, 0
      %s43 = sadd.s32 %s42, 1
      %s44 = scalar_select %p41, %s42, %s43
      %p47 = pneg %p41
      %p48 = scmp.eq.s32.totalorder %s20, 1
      %p49 = por %p47, %p48
      %p50 = scmp.ne.s32.totalorder %s42, %s45
      %p51 = scmp.eq.s32.totalorder %s20, 0
      %p52 = por %p50, %p51
      %p53 = scmp.ne.s32.totalorder %s42, %s45
      %p54 = scmp.eq.s32.totalorder %s25, 1
      %p55 = por %p53, %p54
      %p56 = scmp.ne.s32.totalorder %s45, %s46
      %p57 = scmp.eq.s32.totalorder %s25, 0
      %p58 = por %p56, %p57
      %p59 = scmp.ne.s32.totalorder %s45, %s46
      %p60 = scmp.eq.s32.totalorder %s26, 1
      %p61 = por %p59, %p60
      %p63 = scmp.ne.s32.totalorder %s46, %s62
      %p64 = scmp.eq.s32.totalorder %s26, 0
      %p65 = por %p63, %p64
      %s66 = ssub.s32 %s27, %s39
      %p67 = scmp.eq.s32.totalorder %s66, 0
      %s69 = sadd.s32 %s68, 1
      %s70 = scalar_select %p67, %s68, %s69
      %p73 = pneg %p67
      %p74 = scmp.eq.s32.totalorder %s20, 1
      %p75 = por %p73, %p74
      %p76 = scmp.ne.s32.totalorder %s68, %s71
      %p77 = scmp.eq.s32.totalorder %s20, 0
      %p78 = por %p76, %p77
      %p79 = scmp.ne.s32.totalorder %s68, %s71
      %p80 = scmp.eq.s32.totalorder %s25, 1
      %p81 = por %p79, %p80
      %p82 = scmp.ne.s32.totalorder %s71, %s72
      %p83 = scmp.eq.s32.totalorder %s25, 0
      %p84 = por %p82, %p83
      %p85 = scmp.ne.s32.totalorder %s71, %s72
      %p86 = scmp.eq.s32.totalorder %s26, 1
      %p87 = por %p85, %p86
      %p89 = scmp.ne.s32.totalorder %s72, %s88
      %p90 = scmp.eq.s32.totalorder %s26, 0
      %p91 = por %p89, %p90
      %s92 = ssub.s32 %s28, %s35
      %s93 = ssub.s32 %s27, %s39
      %s94 = sor.u32 %s92, %s93
      %p95 = scmp.eq.s32.totalorder %s94, 0
      %s97 = sadd.s32 %s96, 1
      %s98 = scalar_select %p95, %s96, %s97
      %p101 = pneg %p95
      %p102 = scmp.eq.s32.totalorder %s20, 1
      %p103 = por %p101, %p102
      %p104 = scmp.ne.s32.totalorder %s96, %s99
      %p105 = scmp.eq.s32.totalorder %s20, 0
      %p106 = por %p104, %p105
      %p107 = scmp.ne.s32.totalorder %s96, %s99
      %p108 = scmp.eq.s32.totalorder %s25, 1
      %p109 = por %p107, %p108
      %p110 = scmp.ne.s32.totalorder %s99, %s100
      %p111 = scmp.eq.s32.totalorder %s25, 0
      %p112 = por %p110, %p111
      %p113 = scmp.ne.s32.totalorder %s99, %s100
      %p114 = scmp.eq.s32.totalorder %s26, 1
      %p115 = por %p113, %p114
      %p117 = scmp.ne.s32.totalorder %s100, %s116
      %p118 = scmp.eq.s32.totalorder %s26, 0
      %p119 = por %p117, %p118
      %s120 = ssub.s32 %s28, %s35
      %s121 = ssub.s32 %s27, %s39
      %s122 = sor.u32 %s120, %s121
      %p123 = scmp.eq.s32.totalorder %s122, 0
      %s125 = sadd.s32 %s124, 1
      %s126 = scalar_select %p123, %s124, %s125
      %p129 = pneg %p123
      %p130 = scmp.eq.s32.totalorder %s20, 1
      %p131 = por %p129, %p130
      %p132 = scmp.ne.s32.totalorder %s124, %s127
      %p133 = scmp.eq.s32.totalorder %s20, 0
      %p134 = por %p132, %p133
      %p135 = scmp.ne.s32.totalorder %s124, %s127
      %p136 = scmp.eq.s32.totalorder %s25, 1
      %p137 = por %p135, %p136
      %p138 = scmp.ne.s32.totalorder %s127, %s128
      %p139 = scmp.eq.s32.totalorder %s25, 0
      %p140 = por %p138, %p139
      %p141 = scmp.ne.s32.totalorder %s127, %s128
      %p142 = scmp.eq.s32.totalorder %s26, 1
      %p143 = por %p141, %p142
      %p145 = scmp.ne.s32.totalorder %s128, %s144
      %p146 = scmp.eq.s32.totalorder %s26, 0
      %p147 = por %p145, %p146
      %s148 = ssub.s32 %s28, %s35
      %s149 = ssub.s32 %s27, %s39
      %s150 = sor.u32 %s148, %s149
      %p151 = scmp.eq.s32.totalorder %s150, 0
      %s153 = sadd.s32 %s152, 1
      %s154 = scalar_select %p151, %s152, %s153
      %p157 = pneg %p151
      %p158 = scmp.eq.s32.totalorder %s20, 1
      %p159 = por %p157, %p158
      %p160 = scmp.ne.s32.totalorder %s152, %s155
      %p161 = scmp.eq.s32.totalorder %s20, 0
      %p162 = por %p160, %p161
      %p163 = scmp.ne.s32.totalorder %s152, %s155
      %p164 = scmp.eq.s32.totalorder %s25, 1
      %p165 = por %p163, %p164
      %p166 = scmp.ne.s32.totalorder %s155, %s156
      %p167 = scmp.eq.s32.totalorder %s25, 0
      %p168 = por %p166, %p167
      %p169 = scmp.ne.s32.totalorder %s155, %s156
      %p170 = scmp.eq.s32.totalorder %s26, 1
      %p171 = por %p169, %p170
      %p173 = scmp.ne.s32.totalorder %s156, %s172
      %p174 = scmp.eq.s32.totalorder %s26, 0
      %p175 = por %p173, %p174
      %s176 = ssub.s32 %s28, %s35
      %s177 = ssub.s32 %s27, %s39
      %s178 = sor.u32 %s176, %s177
      %p179 = scmp.eq.s32.totalorder %s178, 0
      %s181 = sadd.s32 %s180, 1
      %s182 = scalar_select %p179, %s180, %s181
      %p185 = pneg %p179
      %p186 = scmp.eq.s32.totalorder %s20, 1
      %p187 = por %p185, %p186
      %p188 = scmp.ne.s32.totalorder %s180, %s183
      %p189 = scmp.eq.s32.totalorder %s20, 0
      %p190 = por %p188, %p189
      %p191 = scmp.ne.s32.totalorder %s180, %s183
      %p192 = scmp.eq.s32.totalorder %s25, 1
      %p193 = por %p191, %p192
      %p194 = scmp.ne.s32.totalorder %s183, %s184
      %p195 = scmp.eq.s32.totalorder %s25, 0
      %p196 = por %p194, %p195
      %p197 = scmp.ne.s32.totalorder %s183, %s184
      %p198 = scmp.eq.s32.totalorder %s26, 1
      %p199 = por %p197, %p198
      %p201 = scmp.ne.s32.totalorder %s184, %s200
      %p202 = scmp.eq.s32.totalorder %s26, 0
      %p203 = por %p201, %p202
      %p204 = scmp.le.s32.totalorder 1, %s20
      %p205 = scmp.lt.s32.totalorder %s20, 3
      %p206 = pnand %p204, %p205
      %p207 = pneg %p206
      // Predicated region
      $region9: #{tpu_custom_call.1} parent=5 // pred_check
        _
      $region10: #{tpu_custom_call.1} parent=5 // pred_check_branch
        %209 = sbr.rel (%p206) target = $region12
      $region11: #{tpu_custom_call.1} parent=5 // pred_region
        %s210 = ssub.s32 %s20, 1
        // Predicated region
        $region13: #{tpu_custom_call.1} parent=11 // pred_check
          %p211 = pneg %p58
        $region14: #{tpu_custom_call.1} parent=11 // pred_check_branch
          %213 = sbr.rel (%p211) target = $region16
        $region15: #{tpu_custom_call.1} parent=11 // pred_region
          %s215 = ssub.s32 128, 128
          %216 = vsyncadd [#allocation3], %s215
          %s217 = smul.addr %s29, 128
          %s218 = scalar_lea.hbm %s0, %s217
          %s220 = sshll.u32 [#allocation2], 4
          %s221 = int_to_ptr.vmem [resolvable:$true] %s220
          %223 = dma.hbm_to_vmem [thread:$0]  %s218, 128, %s221, [#allocation3]
        $region16: #{tpu_custom_call.1} parent=11 // pred_fallthru
          _
        // Predicated region
        $region17: #{tpu_custom_call.1} parent=11 // pred_check
          %p224 = pneg %p84
        $region18: #{tpu_custom_call.1} parent=11 // pred_check_branch
          %226 = sbr.rel (%p224) target = $region20
        $region19: #{tpu_custom_call.1} parent=11 // pred_region
          %s228 = ssub.s32 128, 128
          %229 = vsyncadd [#allocation6], %s228
          %s230 = smul.addr %s29, 128
          %s231 = scalar_lea.hbm %s1, %s230
          %s233 = sshll.u32 [#allocation5], 4
          %s234 = int_to_ptr.vmem [resolvable:$true] %s233
          %236 = dma.hbm_to_vmem [thread:$0]  %s231, 128, %s234, [#allocation6]
        $region20: #{tpu_custom_call.1} parent=11 // pred_fallthru
          _
      $region12: #{tpu_custom_call.1} parent=5 // pred_fallthru
        _
      %p237 = scmp.lt.s32.totalorder %s20, 2
      // Predicated region
      $region21: #{tpu_custom_call.1} parent=5 // pred_check
        %p238 = pneg %p237
      $region22: #{tpu_custom_call.1} parent=5 // pred_check_branch
        %240 = sbr.rel (%p238) target = $region24
      $region23: #{tpu_custom_call.1} parent=5 // pred_region
        // Predicated region
        $region25: #{tpu_custom_call.1} parent=23 // pred_check
          %p241 = pneg %p106
        $region26: #{tpu_custom_call.1} parent=23 // pred_check_branch
          %243 = sbr.rel (%p241) target = $region28
        $region27: #{tpu_custom_call.1} parent=23 // pred_region
          %s244 = sand.u32 %s20, 1
          %s245 = scalar_lea.sflag [#allocation3], %s244
          %s246 = sand.u32 %s96, 1
          %s247 = smul.addr %s246, 32
          %s248 = scalar_lea.vmem [#allocation7], %s247
          %s249 = smul.u32 4, %s28
          %s251 = ssub.s32 512, 512
          %252 = vsyncadd %s245, %s251
          %s253 = sadd.s32 %s27, %s249
          %s254 = smul.addr %s253, 128
          %s255 = scalar_lea.hbm %s2, %s254
          %s256 = sshll.u32 %s248, 4
          %s257 = int_to_ptr.vmem [resolvable:$true] %s256
          %262 = dma.hbm_to_vmem [thread:$0]  %s255, 512, %s257, %s245, 128, 128, 8
        $region28: #{tpu_custom_call.1} parent=23 // pred_fallthru
          _
        // Predicated region
        $region29: #{tpu_custom_call.1} parent=23 // pred_check
          %p263 = pneg %p134
        $region30: #{tpu_custom_call.1} parent=23 // pred_check_branch
          %265 = sbr.rel (%p263) target = $region32
        $region31: #{tpu_custom_call.1} parent=23 // pred_region
          %s266 = sand.u32 %s20, 1
          %s267 = scalar_lea.sflag [#allocation3], %s266
          %s268 = sand.u32 %s124, 1
          %s269 = smul.addr %s268, 32
          %s270 = scalar_lea.vmem [#allocation8], %s269
          %s271 = smul.u32 4, %s28
          %s273 = ssub.s32 512, 512
          %274 = vsyncadd %s267, %s273
          %s275 = sadd.s32 %s27, %s271
          %s276 = smul.addr %s275, 128
          %s277 = scalar_lea.hbm %s3, %s276
          %s278 = sshll.u32 %s270, 4
          %s279 = int_to_ptr.vmem [resolvable:$true] %s278
          %284 = dma.hbm_to_vmem [thread:$0]  %s277, 512, %s279, %s267, 128, 128, 8
        $region32: #{tpu_custom_call.1} parent=23 // pred_fallthru
          _
      $region24: #{tpu_custom_call.1} parent=5 // pred_fallthru
        _
      %p285 = scmp.le.s32.totalorder 1, %s20
      %p286 = scmp.lt.s32.totalorder %s20, 3
      %p287 = pnand %p285, %p286
      %p288 = pneg %p287
      // Predicated region
      $region33: #{tpu_custom_call.1} parent=5 // pred_check
        _
      $region34: #{tpu_custom_call.1} parent=5 // pred_check_branch
        %290 = sbr.rel (%p287) target = $region36
      $region35: #{tpu_custom_call.1} parent=5 // pred_region
        %s291 = ssub.s32 %s20, 1
        // Predicated region
        $region37: #{tpu_custom_call.1} parent=35 // pred_check
          %p292 = pneg %p58
        $region38: #{tpu_custom_call.1} parent=35 // pred_check_branch
          %294 = sbr.rel (%p292) target = $region40
        $region39: #{tpu_custom_call.1} parent=35 // pred_region
          %295 = dma.done [#allocation3], 128
        $region40: #{tpu_custom_call.1} parent=35 // pred_fallthru
          _
        // Predicated region
        $region41: #{tpu_custom_call.1} parent=35 // pred_check
          %p296 = pneg %p84
        $region42: #{tpu_custom_call.1} parent=35 // pred_check_branch
          %298 = sbr.rel (%p296) target = $region44
        $region43: #{tpu_custom_call.1} parent=35 // pred_region
          %299 = dma.done [#allocation6], 128
        $region44: #{tpu_custom_call.1} parent=35 // pred_fallthru
          _
        %s300 = sand.u32 %s25, 1
        %s301 = scalar_lea.sflag [#allocation3], %s300
        %s302 = sand.u32 %s99, 1
        %s303 = smul.addr %s302, 32
        %s304 = scalar_lea.vmem [#allocation7], %s303
        // Predicated region
        $region45: #{tpu_custom_call.1} parent=35 // pred_check
          %p305 = pneg %p112
        $region46: #{tpu_custom_call.1} parent=35 // pred_check_branch
          %307 = sbr.rel (%p305) target = $region48
        $region47: #{tpu_custom_call.1} parent=35 // pred_region
          %308 = dma.done %s301, 512
        $region48: #{tpu_custom_call.1} parent=35 // pred_fallthru
          _
        %s309 = sand.u32 %s25, 1
        %s310 = scalar_lea.sflag [#allocation3], %s309
        %s311 = sand.u32 %s127, 1
        %s312 = smul.addr %s311, 32
        %s313 = scalar_lea.vmem [#allocation8], %s312
        // Predicated region
        $region49: #{tpu_custom_call.1} parent=35 // pred_check
          %p314 = pneg %p140
        $region50: #{tpu_custom_call.1} parent=35 // pred_check_branch
          %316 = sbr.rel (%p314) target = $region52
        $region51: #{tpu_custom_call.1} parent=35 // pred_region
          %317 = dma.done %s310, 512
        $region52: #{tpu_custom_call.1} parent=35 // pred_fallthru
          _
        %p318 = pneg %p58
        %p319 = pneg %p55
        %p320 = pneg %p84
        %p321 = pneg %p81
        %s322 = sand.u32 %s25, 1
        %s323 = scalar_lea.sflag [#allocation3], %s322
        %s324 = sand.u32 %s99, 1
        %s325 = smul.addr %s324, 32
        %s326 = scalar_lea.vmem [#allocation7], %s325
        %p327 = pneg %p112
        %p328 = pneg %p109
        %s329 = sand.u32 %s25, 1
        %s330 = scalar_lea.sflag [#allocation3], %s329
        %s331 = sand.u32 %s127, 1
        %s332 = smul.addr %s331, 32
        %s333 = scalar_lea.vmem [#allocation8], %s332
        %p334 = pneg %p140
        %p335 = pneg %p137
        %p336 = pneg %p168
        %p337 = pneg %p165
        %s338 = sand.u32 %s155, 1
        %s339 = scalar_lea.sflag [#allocation4], %s338
        %s340 = sand.u32 %s155, 1
        %s341 = smul.addr %s340, 32
        %s342 = scalar_lea.vmem [#allocation9], %s341
        %p343 = pneg %p196
        %p344 = pneg %p193
        %s345 = sand.u32 %s183, 1
        %s346 = scalar_lea.sflag [#allocation11], %s345
        %s347 = sand.u32 %s183, 1
        %s348 = smul.addr %s347, 32
        %s349 = scalar_lea.vmem [#allocation10], %s348
        %s350 = smul.u32 4, %s30
        %s351 = smul.u32 4, %s30
        %s352 = smul.u32 4, %s30
        %s353 = smul.u32 4, %s30
        %v354 = vld [vmem:[#allocation2] sm:$0xff]
        %v355 = vld [vmem:[#allocation5] sm:$0xff]
        %v356 = vld [vmem:[%s304] sm:$0xff]
        %v357 = vld [vmem:[%s304 + $0x8] sm:$0xff]
        %v358 = vld [vmem:[%s304 + $0x10] sm:$0xff]
        %v359 = vld [vmem:[%s304 + $0x18] sm:$0xff]
        %v360 = vmul.f32 %v356, %v354
        %v361 = vmul.f32 %v357, %v354
        %v362 = vmul.f32 %v358, %v354
        %v363 = vmul.f32 %v359, %v354
        %365 = vrot.lane.b32.xlu0 %v355, 16
        %v366 = vpop.permute.xlu0 %365
        %v368 = vmul.f32 %v356, %v366
        %v369 = vmul.f32 %v357, %v366
        %v370 = vmul.f32 %v358, %v366
        %v371 = vmul.f32 %v359, %v366
        %376 = vrot.lane.b32.xlu0 %v368, 112
        %v377 = vpop.permute.xlu0 %376
        %378 = vrot.lane.b32.xlu0 %v369, 112
        %v379 = vpop.permute.xlu0 %378
        %380 = vrot.lane.b32.xlu0 %v370, 112
        %v381 = vpop.permute.xlu0 %380
        %382 = vrot.lane.b32.xlu0 %v371, 112
        %v383 = vpop.permute.xlu0 %382
        %v388 = vsub.f32 %v360, %v377
        %v389 = vsub.f32 %v361, %v379
        %v390 = vsub.f32 %v362, %v381
        %v391 = vsub.f32 %v363, %v383
        %393 = vrot.lane.b32.xlu0 %v354, 16
        %v394 = vpop.permute.xlu0 %393
        %v396 = vmul.f32 %v356, %v394
        %v397 = vmul.f32 %v357, %v394
        %v398 = vmul.f32 %v358, %v394
        %v399 = vmul.f32 %v359, %v394
        %v400 = vmul.f32 %v356, %v355
        %v401 = vmul.f32 %v357, %v355
        %v402 = vmul.f32 %v358, %v355
        %v403 = vmul.f32 %v359, %v355
        %408 = vrot.lane.b32.xlu0 %v400, 16
        %v409 = vpop.permute.xlu0 %408
        %410 = vrot.lane.b32.xlu0 %v401, 16
        %v411 = vpop.permute.xlu0 %410
        %412 = vrot.lane.b32.xlu0 %v402, 16
        %v413 = vpop.permute.xlu0 %412
        %414 = vrot.lane.b32.xlu0 %v403, 16
        %v415 = vpop.permute.xlu0 %414
        %v420 = vadd.f32 %v396, %v409
        %v421 = vadd.f32 %v397, %v411
        %v422 = vadd.f32 %v398, %v413
        %v423 = vadd.f32 %v399, %v415
        %vm424 = vcmask 130048
        %v425 = vsel %vm424, %v388, %v420
        %v426 = vsel %vm424, %v389, %v421
        %v427 = vsel %vm424, %v390, %v422
        %v428 = vsel %vm424, %v391, %v423
        %vm429 = vcmask 261120
        %430 = vst.msk [vmem:[%s342] sm:$0xff] %vm429, %v425
        %431 = vst.msk [vmem:[%s342 + $0x8] sm:$0xff] %vm429, %v426
        %432 = vst.msk [vmem:[%s342 + $0x10] sm:$0xff] %vm429, %v427
        %433 = vst.msk [vmem:[%s342 + $0x18] sm:$0xff] %vm429, %v428
        %v434 = vld [vmem:[%s313] sm:$0xff]
        %v435 = vld [vmem:[%s313 + $0x8] sm:$0xff]
        %v436 = vld [vmem:[%s313 + $0x10] sm:$0xff]
        %v437 = vld [vmem:[%s313 + $0x18] sm:$0xff]
        %v438 = vmul.f32 %v434, %v354
        %v439 = vmul.f32 %v435, %v354
        %v440 = vmul.f32 %v436, %v354
        %v441 = vmul.f32 %v437, %v354
        %v442 = vmul.f32 %v434, %v366
        %v443 = vmul.f32 %v435, %v366
        %v444 = vmul.f32 %v436, %v366
        %v445 = vmul.f32 %v437, %v366
        %450 = vrot.lane.b32.xlu0 %v442, 112
        %v451 = vpop.permute.xlu0 %450
        %452 = vrot.lane.b32.xlu0 %v443, 112
        %v453 = vpop.permute.xlu0 %452
        %454 = vrot.lane.b32.xlu0 %v444, 112
        %v455 = vpop.permute.xlu0 %454
        %456 = vrot.lane.b32.xlu0 %v445, 112
        %v457 = vpop.permute.xlu0 %456
        %v462 = vsub.f32 %v438, %v451
        %v463 = vsub.f32 %v439, %v453
        %v464 = vsub.f32 %v440, %v455
        %v465 = vsub.f32 %v441, %v457
        %v466 = vmul.f32 %v434, %v394
        %v467 = vmul.f32 %v435, %v394
        %v468 = vmul.f32 %v436, %v394
        %v469 = vmul.f32 %v437, %v394
        %v470 = vmul.f32 %v434, %v355
        %v471 = vmul.f32 %v435, %v355
        %v472 = vmul.f32 %v436, %v355
        %v473 = vmul.f32 %v437, %v355
        %478 = vrot.lane.b32.xlu0 %v470, 16
        %v479 = vpop.permute.xlu0 %478
        %480 = vrot.lane.b32.xlu0 %v471, 16
        %v481 = vpop.permute.xlu0 %480
        %482 = vrot.lane.b32.xlu0 %v472, 16
        %v483 = vpop.permute.xlu0 %482
        %484 = vrot.lane.b32.xlu0 %v473, 16
        %v485 = vpop.permute.xlu0 %484
        %v490 = vadd.f32 %v466, %v479
        %v491 = vadd.f32 %v467, %v481
        %v492 = vadd.f32 %v468, %v483
        %v493 = vadd.f32 %v469, %v485
        %v494 = vsel %vm424, %v462, %v490
        %v495 = vsel %vm424, %v463, %v491
        %v496 = vsel %vm424, %v464, %v492
        %v497 = vsel %vm424, %v465, %v493
        %498 = vst.msk [vmem:[%s349] sm:$0xff] %vm429, %v494
        %499 = vst.msk [vmem:[%s349 + $0x8] sm:$0xff] %vm429, %v495
        %500 = vst.msk [vmem:[%s349 + $0x10] sm:$0xff] %vm429, %v496
        %501 = vst.msk [vmem:[%s349 + $0x18] sm:$0xff] %vm429, %v497
        %s502 = sand.u32 %s155, 1
        %s503 = scalar_lea.sflag [#allocation4], %s502
        %s504 = sand.u32 %s155, 1
        %s505 = smul.addr %s504, 32
        %s506 = scalar_lea.vmem [#allocation9], %s505
        %s507 = sand.u32 %s183, 1
        %s508 = scalar_lea.sflag [#allocation11], %s507
        %s509 = sand.u32 %s183, 1
        %s510 = smul.addr %s509, 32
        %s511 = scalar_lea.vmem [#allocation10], %s510
        // Predicated region
        $region53: #{tpu_custom_call.1} parent=35 // pred_check
          %p512 = pneg %p165
        $region54: #{tpu_custom_call.1} parent=35 // pred_check_branch
          %514 = sbr.rel (%p512) target = $region56
        $region55: #{tpu_custom_call.1} parent=35 // pred_region
          %s515 = smul.u32 4, %s30
          %s517 = ssub.s32 512, 512
          %518 = vsyncadd %s503, %s517
          %s519 = sadd.s32 %s29, %s515
          %s520 = smul.addr %s519, 128
          %s521 = scalar_lea.hbm %s4, %s520
          %s522 = sshll.u32 %s506, 4
          %s523 = int_to_ptr.vmem [resolvable:$true] %s522
          %528 = dma.vmem_to_hbm [thread:$0]  %s523, 512, %s521, %s503, 128, 128, 8
        $region56: #{tpu_custom_call.1} parent=35 // pred_fallthru
          _
        // Predicated region
        $region57: #{tpu_custom_call.1} parent=35 // pred_check
          %p529 = pneg %p193
        $region58: #{tpu_custom_call.1} parent=35 // pred_check_branch
          %531 = sbr.rel (%p529) target = $region60
        $region59: #{tpu_custom_call.1} parent=35 // pred_region
          %s532 = smul.u32 4, %s30
          %s534 = ssub.s32 512, 512
          %535 = vsyncadd %s508, %s534
          %s536 = sadd.s32 %s29, %s532
          %s537 = smul.addr %s536, 128
          %s538 = scalar_lea.hbm %s5, %s537
          %s539 = sshll.u32 %s511, 4
          %s540 = int_to_ptr.vmem [resolvable:$true] %s539
          %545 = dma.vmem_to_hbm [thread:$0]  %s540, 512, %s538, %s508, 128, 128, 8
        $region60: #{tpu_custom_call.1} parent=35 // pred_fallthru
          _
      $region36: #{tpu_custom_call.1} parent=5 // pred_fallthru
        _
      %p546 = scmp.le.s32.totalorder 2, %s20
      // Predicated region
      $region61: #{tpu_custom_call.1} parent=5 // pred_check
        %p547 = pneg %p546
      $region62: #{tpu_custom_call.1} parent=5 // pred_check_branch
        %549 = sbr.rel (%p547) target = $region64
      $region63: #{tpu_custom_call.1} parent=5 // pred_region
        %s550 = ssub.s32 %s20, 2
        // Predicated region
        $region65: #{tpu_custom_call.1} parent=63 // pred_check
          %p551 = pneg %p171
        $region66: #{tpu_custom_call.1} parent=63 // pred_check_branch
          %553 = sbr.rel (%p551) target = $region68
        $region67: #{tpu_custom_call.1} parent=63 // pred_region
          %s554 = sand.u32 %s156, 1
          %s555 = scalar_lea.sflag [#allocation4], %s554
          %s556 = sand.u32 %s156, 1
          %s557 = smul.addr %s556, 32
          %s558 = scalar_lea.vmem [#allocation9], %s557
          %559 = dma.done %s555, 512
        $region68: #{tpu_custom_call.1} parent=63 // pred_fallthru
          _
        // Predicated region
        $region69: #{tpu_custom_call.1} parent=63 // pred_check
          %p560 = pneg %p199
        $region70: #{tpu_custom_call.1} parent=63 // pred_check_branch
          %562 = sbr.rel (%p560) target = $region72
        $region71: #{tpu_custom_call.1} parent=63 // pred_region
          %s563 = sand.u32 %s184, 1
          %s564 = scalar_lea.sflag [#allocation11], %s563
          %s565 = sand.u32 %s184, 1
          %s566 = smul.addr %s565, 32
          %s567 = scalar_lea.vmem [#allocation10], %s566
          %568 = dma.done %s564, 512
        $region72: #{tpu_custom_call.1} parent=63 // pred_fallthru
          _
      $region64: #{tpu_custom_call.1} parent=5 // pred_fallthru
        _
    $region6: #{tpu_custom_call.1} parent=1 // loop_footer
      %s24 = sadd.s32 1, %s20
    $region7: #{tpu_custom_call.1} parent=1 // loop_footer_branch
      %19 = sbr.rel target = $region3
    $region8: #{tpu_custom_call.1} parent=1 // loop_exit
      _
    %569 = vsyncpa [#allocation3], 1
    %s570 = scalar_lea.sflag [#allocation3], 1
    %571 = vsyncpa %s570, 1
    %572 = vsyncpa [#allocation6], 1
    %573 = vsyncpa [#allocation4], 1
    %s574 = scalar_lea.sflag [#allocation4], 1
    %575 = vsyncpa %s574, 1
    %576 = vsyncpa [#allocation11], 1
    %s577 = scalar_lea.sflag [#allocation11], 1
    %578 = vsyncpa %s577, 1

</llo_original>
